<compile_context>
chip_gen: v6e
topology: v6e:2x2x1
jax: 0.10.0
libtpu: 0.0.40
codegen_flags: <defaults>
</compile_context>

<pallas_src>
import functools

import jax
import jax.numpy as jnp
from jax import lax
from jax.experimental import pallas as pl
from jax.experimental.pallas import tpu as pltpu


# ---------------------------------------------------------------------------
# Kernel 1: fused (im2col-patches @ W) * scale + shift, then ReLU
# (conv + BatchNorm(eval) + ReLU).  bf16 operands, f32 accumulation, bf16 out.
# ---------------------------------------------------------------------------
def _mm_scale_shift_relu_kernel(p_ref, w_ref, scale_ref, shift_ref, o_ref):
    y = jnp.dot(p_ref[...], w_ref[...], preferred_element_type=jnp.float32)
    o_ref[...] = jnp.maximum(y * scale_ref[...] + shift_ref[...],
                             0.0).astype(o_ref.dtype)


def matmul_scale_shift_relu(p_bf16, w_bf16, scale, shift, tile_m=1024):
    """(M, K)bf16 @ (K, OC)bf16 * scale + shift, ReLU -> (M, OC)bf16.

    Row-tiled grid (parallel axis -> megacore shardable); when M <= tile_m a
    single block covers everything (block == full dims, so the (8,128) rule is
    satisfied for any M); for large M the grid pipelines double-buffered tiles.
    """
    M, K = p_bf16.shape
    OC = w_bf16.shape[1]
    tm = M if M <= tile_m else tile_m
    grid = (pl.cdiv(M, tm),)
    return pl.pallas_call(
        _mm_scale_shift_relu_kernel,
        out_shape=jax.ShapeDtypeStruct((M, OC), jnp.bfloat16),
        grid_spec=pltpu.PrefetchScalarGridSpec(
            num_scalar_prefetch=0,
            grid=grid,
            in_specs=[pl.BlockSpec((tm, K), lambda i: (i, 0)),
                      pl.BlockSpec((K, OC), lambda i: (0, 0)),
                      pl.BlockSpec((1, OC), lambda i: (0, 0)),
                      pl.BlockSpec((1, OC), lambda i: (0, 0))],
            out_specs=pl.BlockSpec((tm, OC), lambda i: (i, 0))),
        compiler_params=pltpu.CompilerParams(
            dimension_semantics=("parallel",),
            vmem_limit_bytes=32 * 1024 * 1024),
    )(p_bf16, w_bf16, scale, shift)


def conv_bn_relu_nhwc(x_nhwc, w_oihw, conv_b, bn_gamma, bn_beta, bn_mean,
                      bn_var, stride, eps=1e-5, w_scale=1.0):
    """x_nhwc: (N, H, W, C) -> (N, OH, OW, OC) bf16 (stays channels-last).

    `w_scale` folds an input scaling (e.g. 1/255) into the conv weights so the
    activation tensor is never touched in HBM.
    """
    N, H, W, C = x_nhwc.shape
    OC, _, KH, KW = w_oihw.shape
    oh = (H - KH) // stride + 1
    ow = (W - KW) // stride + 1
    # Single fused patch-extraction op (replaces the KH*KW slice/stack glue).
    # Output feature order is (c, kh, kw), channel-major.
    patches = lax.conv_general_dilated_patches(
        x_nhwc.astype(jnp.bfloat16), (KH, KW), (stride, stride), "VALID",
        dimension_numbers=("NHWC", "HWIO", "NHWC"))
    p2d = patches.reshape(N * oh * ow, C * KH * KW)
    # weights reordered to the (c, kh, kw) feature order; input scale folded.
    w2d = (w_oihw.transpose(1, 2, 3, 0).reshape(C * KH * KW, OC)
           * jnp.float32(w_scale)).astype(jnp.bfloat16)
    # BatchNorm (eval) folded to per-channel scale/shift; conv bias folded in.
    scale = (bn_gamma / jnp.sqrt(bn_var + eps)).astype(jnp.float32)
    shift = (bn_beta + (conv_b - bn_mean) * scale).astype(jnp.float32)
    out = matmul_scale_shift_relu(p2d, w2d, scale.reshape(1, OC),
                                  shift.reshape(1, OC))
    return out.reshape(N, oh, ow, OC)


# ---------------------------------------------------------------------------
# Kernel 2: fused LSTM (single layer) + dueling head.
# ---------------------------------------------------------------------------
def _lstm_dueling_kernel(num_actions,
                         x_ref, h0_ref, c0_ref, wih_ref, whh_ref, b_ref,
                         wqv_ref, bqv_ref,
                         q_ref, hN_ref, cN_ref,
                         gates_scr, hh_scr):
    A = num_actions
    B, Hd = h0_ref.shape
    TB = x_ref.shape[0]
    T = TB // B

    # Hoisted input projection for all timesteps: ONE (T*B, D) @ (D, 4H) MXU
    # matmul, written to a VMEM scratch that is read per step.
    gates_scr[...] = (jnp.dot(x_ref[...], wih_ref[...],
                              preferred_element_type=jnp.float32)
                      + b_ref[...])

    whh = whh_ref[...]                      # (H, 4H) f32, loaded once

    def step(t, carry):
        h, c = carry
        # ONE merged recurrent matmul for all four gates (PyTorch order i,f,g,o).
        gates = (gates_scr[pl.ds(t * B, B), :]
                 + jnp.dot(h, whh, preferred_element_type=jnp.float32))
        sg = jax.nn.sigmoid(gates)          # one EUP push over all 4H lanes
        th = jnp.tanh(gates)                # one EUP push over all 4H lanes
        i = sg[:, 0 * Hd:1 * Hd]
        f = sg[:, 1 * Hd:2 * Hd]
        g = th[:, 2 * Hd:3 * Hd]
        o = sg[:, 3 * Hd:4 * Hd]
        c_new = f * c + i * g
        h_new = o * jnp.tanh(c_new)
        hh_scr[pl.ds(t * B, B), :] = h_new  # off the recurrence chain
        return h_new, c_new

    carry = (h0_ref[...], c0_ref[...])
    if T <= 16:
        # Fully unrolled: static scratch offsets, LLO overlaps adjacent steps.
        for t in range(T):
            carry = step(t, carry)
    else:
        carry = lax.fori_loop(0, T, step, carry)
    h_fin, c_fin = carry
    hN_ref[...] = h_fin
    cN_ref[...] = c_fin

    # Dueling head hoisted OUT of the recurrence: one lane-dense matmul over
    # all timesteps.  wqv columns: [0:A) = Wq, [A] = Wv, rest zero (same for
    # bqv), so sum(qv) = sum(advantages) + v  =>  mean(a) = (sum - v)/A.
    qv = (jnp.dot(hh_scr[...], wqv_ref[...],
                  preferred_element_type=jnp.float32) + bqv_ref[...])
    v = qv[:, A:A + 1]
    mean_a = (jnp.sum(qv, axis=1, keepdims=True) - v) * (1.0 / A)
    # Full 128-lane store; columns >= A are garbage and sliced off in glue.
    q_ref[...] = v + qv - mean_a


def lstm_dueling_head(x_tb, h0, c0, w_ih, w_hh, b, wq, bq, wv, bv):
    """x_tb: time-major (T*B, D); h0/c0: (B, H); w_ih: (D, 4H); w_hh: (H, 4H);
    b: (1, 4H) (= b_ih + b_hh); wq: (H, A); wv: (H, 1).
    Returns (q_tb (T*B, A) f32, hN (B, H) f32, cN (B, H) f32)."""
    TB, _ = x_tb.shape
    B, H = h0.shape
    A = wq.shape[1]
    T = TB // B
    P = 128                                   # lane-padded head width
    wqv = (jnp.zeros((H, P), jnp.float32)
           .at[:, :A].set(wq.astype(jnp.float32))
           .at[:, A].set(wv[:, 0].astype(jnp.float32)))
    bqv = (jnp.zeros((1, P), jnp.float32)
           .at[0, :A].set(bq.astype(jnp.float32))
           .at[0, A].set(bv[0].astype(jnp.float32)))
    kernel = functools.partial(_lstm_dueling_kernel, A)
    q_pad, hN, cN = pl.pallas_call(
        kernel,
        out_shape=(jax.ShapeDtypeStruct((TB, P), jnp.float32),
                   jax.ShapeDtypeStruct((B, H), jnp.float32),
                   jax.ShapeDtypeStruct((B, H), jnp.float32)),
        scratch_shapes=[pltpu.VMEM((TB, 4 * H), jnp.float32),   # gate inputs
                        pltpu.VMEM((TB, H), jnp.float32)],      # h history
        compiler_params=pltpu.CompilerParams(
            vmem_limit_bytes=32 * 1024 * 1024),
    )(x_tb.astype(jnp.bfloat16), h0.astype(jnp.float32), c0.astype(jnp.float32),
      w_ih.astype(jnp.bfloat16), w_hh.astype(jnp.float32),
      b.astype(jnp.float32), wqv, bqv)
    return q_pad[:, :A], hN, cN


# ---------------------------------------------------------------------------
# Module params / init (deterministic, synthetic)
# ---------------------------------------------------------------------------
class Params:
    inputShape = (4, 32, 32)            # (channels, height, width)
    numActions = 8
    hiddenDimensions = 32
    gameVariables = ("health", "bullets")
    gameVariableBucketSizes = (10, 5)
    gameVariableNumValues = (201, 101)
    embeddingDim = 16
    dropout = 0.0                       # eval-mode dropout == identity
    dueling = True
    noisyLinear = False


def init_params(key, p):
    C, H, W = p.inputShape
    ks = jax.random.split(key, 20)

    def rn(k, shape, s=0.05):
        return jax.random.normal(k, shape, jnp.float32) * s

    params = {}
    params["conv1_w"] = rn(ks[0], (32, C, 8, 8))
    params["conv1_b"] = rn(ks[1], (32,))
    params["bn1_gamma"] = 1.0 + rn(ks[2], (32,))
    params["bn1_beta"] = rn(ks[3], (32,))
    params["bn1_mean"] = rn(ks[4], (32,))
    params["bn1_var"] = 1.0 + jnp.abs(rn(ks[5], (32,)))
    params["conv2_w"] = rn(ks[6], (64, 32, 4, 4))
    params["conv2_b"] = rn(ks[7], (64,))
    params["bn2_gamma"] = 1.0 + rn(ks[8], (64,))
    params["bn2_beta"] = rn(ks[9], (64,))
    params["bn2_mean"] = rn(ks[10], (64,))
    params["bn2_var"] = 1.0 + jnp.abs(rn(ks[11], (64,)))

    oh1 = (H - 8) // 4 + 1
    ow1 = (W - 8) // 4 + 1
    oh2 = (oh1 - 4) // 2 + 1
    ow2 = (ow1 - 4) // 2 + 1
    convOutDim = 64 * oh2 * ow2

    emb_tables = []
    for i, (bs, nv) in enumerate(zip(p.gameVariableBucketSizes,
                                     p.gameVariableNumValues)):
        trueNumEmb = (nv + bs - 1) // bs      # GameVariableEmbedding bucketing
        emb_tables.append(rn(ks[12 + i], (trueNumEmb, p.embeddingDim), 0.1))
    params["emb_tables"] = emb_tables

    outputDim = convOutDim + p.embeddingDim * len(p.gameVariables)
    Hd = p.hiddenDimensions
    params["lstm_w_ih"] = rn(ks[14], (outputDim, 4 * Hd))
    params["lstm_w_hh"] = rn(ks[15], (Hd, 4 * Hd))
    params["lstm_b"] = rn(ks[16], (1, 4 * Hd))          # b_ih + b_hh combined
    params["q_w"] = rn(ks[17], (Hd, p.numActions))
    params["q_b"] = rn(ks[18], (p.numActions,))
    kv1, kv2 = jax.random.split(ks[19])
    params["v_w"] = rn(kv1, (Hd, 1))
    params["v_b"] = rn(kv2, (1,))
    return params


# ---------------------------------------------------------------------------
# DQNModuleRecurrent.forward
# ---------------------------------------------------------------------------
def dqn_recurrent_forward(params, p, inputScreens, inputVariables, prevState):
    """inputScreens: (B, T, C, H, W); inputVariables: list of (B, T) int32;
       prevState: (h0, c0), each (1, B, hidden)  (nn.LSTM num_layers=1)."""
    B, T = inputScreens.shape[0], inputScreens.shape[1]
    N = B * T

    # --- base_forward ---
    x = inputScreens.reshape(N, *inputScreens.shape[2:]).astype(jnp.float32)
    x_nhwc = x.transpose(0, 2, 3, 1)                   # NCHW -> NHWC once
    # /255.0 normalization folded into the conv1 weights (w_scale).
    y1 = conv_bn_relu_nhwc(x_nhwc, params["conv1_w"], params["conv1_b"],
                           params["bn1_gamma"], params["bn1_beta"],
                           params["bn1_mean"], params["bn1_var"],
                           stride=4, w_scale=1.0 / 255.0)
    y2 = conv_bn_relu_nhwc(y1, params["conv2_w"], params["conv2_b"],
                           params["bn2_gamma"], params["bn2_beta"],
                           params["bn2_mean"], params["bn2_var"], stride=2)
    # Single NCHW-compatible flatten (matches torch .view(N, -1)); tiny tensor.
    convOut = y2.transpose(0, 3, 1, 2).reshape(N, -1)           # bf16

    embs = []
    for i, v in enumerate(inputVariables):
        idx = v.reshape(N).astype(jnp.int32) // p.gameVariableBucketSizes[i]
        # embedding gather left in JAX glue (tiny table lookup)
        embs.append(jnp.take(params["emb_tables"][i], idx,
                             axis=0).astype(jnp.bfloat16))
    stateInput = jnp.concatenate([convOut] + embs, axis=1)      # (N, D) bf16
    # dropout: eval-mode identity

    # --- recurrent core + dueling head (single fused kernel) ---
    D = stateInput.shape[1]
    x_tb = stateInput.reshape(B, T, D).transpose(1, 0, 2).reshape(T * B, D)
    h0, c0 = prevState[0][0], prevState[1][0]
    q_tb, hN, cN = lstm_dueling_head(x_tb, h0, c0,
                                     params["lstm_w_ih"], params["lstm_w_hh"],
                                     params["lstm_b"],
                                     params["q_w"], params["q_b"],
                                     params["v_w"], params["v_b"])
    out = q_tb.reshape(T, B, p.numActions).transpose(1, 0, 2)   # (B, T, A)
    nextState = (hN[None], cN[None])
    return out, nextState


if __name__ == "__main__":
    p = Params()
    key = jax.random.PRNGKey(0)
    kp, ks, kv1, kv2, kh, kc = jax.random.split(key, 6)
    params = init_params(kp, p)

    B, T = 2, 4
    C, H, W = p.inputShape
    screens = jax.random.randint(ks, (B, T, C, H, W), 0, 256).astype(jnp.float32)
    var0 = jax.random.randint(kv1, (B, T), 0, p.gameVariableNumValues[0])
    var1 = jax.random.randint(kv2, (B, T), 0, p.gameVariableNumValues[1])
    h0 = jax.random.normal(kh, (1, B, p.hiddenDimensions), jnp.float32) * 0.1
    c0 = jax.random.normal(kc, (1, B, p.hiddenDimensions), jnp.float32) * 0.1

    out, (hN, cN) = dqn_recurrent_forward(params, p, screens, [var0, var1],
                                          (h0, c0))
    jax.block_until_ready((out, hN, cN))
    assert out.shape == (B, T, p.numActions)
    assert hN.shape == (1, B, p.hiddenDimensions)
    assert cN.shape == (1, B, p.hiddenDimensions)
    print("KERNEL_OK")
</pallas_src>

<mosaic_0001>
module attributes {stable_mosaic.version = 11 : i64} {
  func.func @_mm_scale_shift_relu_kernel(%arg0: i32, %arg1: memref<392x256xbf16, #tpu.memory_space<vmem>>, %arg2: memref<256x32xbf16, #tpu.memory_space<vmem>>, %arg3: memref<1x32xf32, #tpu.memory_space<vmem>>, %arg4: memref<1x32xf32, #tpu.memory_space<vmem>>, %arg5: memref<392x32xbf16, #tpu.memory_space<vmem>>) attributes {dimension_semantics = [#tpu.dimension_semantics<parallel>], iteration_bounds = array<i64: 1>, scalar_prefetch = 0 : i64, scratch_operands = 0 : i64, tpu.core_type = #tpu.core_type<tc>, window_params = [{transform_indices = @transform_0, window_bounds = array<i64: 392, 256>}, {pipeline_mode = #tpu.pipeline_mode<synchronous>, transform_indices = @transform_1, window_bounds = array<i64: 256, 32>}, {pipeline_mode = #tpu.pipeline_mode<synchronous>, transform_indices = @transform_2, window_bounds = array<i64: 1, 32>}, {pipeline_mode = #tpu.pipeline_mode<synchronous>, transform_indices = @transform_3, window_bounds = array<i64: 1, 32>}, {transform_indices = @transform_4, window_bounds = array<i64: 392, 32>}]} {
    %c0 = arith.constant 0 : index
    %c0_0 = arith.constant 0 : index
    %0 = vector.load %arg1[%c0, %c0_0] : memref<392x256xbf16, #tpu.memory_space<vmem>>, vector<392x256xbf16>
    %c0_1 = arith.constant 0 : index
    %c0_2 = arith.constant 0 : index
    %1 = vector.load %arg2[%c0_1, %c0_2] : memref<256x32xbf16, #tpu.memory_space<vmem>>, vector<256x32xbf16>
    %cst = arith.constant dense<0.000000e+00> : vector<392x32xf32>
    %2 = tpu.matmul %0, %1, %cst {dimension_numbers = #tpu.dot_dimension_numbers<[1], [0], [0], [1], [0, 0, 1, 1], [], []>} : vector<392x256xbf16>, vector<256x32xbf16>, vector<392x32xf32> -> vector<392x32xf32>
    %c0_3 = arith.constant 0 : index
    %c0_4 = arith.constant 0 : index
    %3 = vector.load %arg3[%c0_3, %c0_4] : memref<1x32xf32, #tpu.memory_space<vmem>>, vector<1x32xf32>
    %4 = vector.broadcast %3 : vector<1x32xf32> to vector<392x32xf32>
    %5 = arith.mulf %2, %4 : vector<392x32xf32>
    %c0_5 = arith.constant 0 : index
    %c0_6 = arith.constant 0 : index
    %6 = vector.load %arg4[%c0_5, %c0_6] : memref<1x32xf32, #tpu.memory_space<vmem>>, vector<1x32xf32>
    %7 = vector.broadcast %6 : vector<1x32xf32> to vector<392x32xf32>
    %8 = arith.addf %5, %7 : vector<392x32xf32>
    %cst_7 = arith.constant 0.000000e+00 : f32
    %9 = vector.broadcast %cst_7 : f32 to vector<392x32xf32>
    %10 = arith.maximumf %8, %9 : vector<392x32xf32>
    %11 = arith.truncf %10 : vector<392x32xf32> to vector<392x32xbf16>
    %c0_8 = arith.constant 0 : index
    %c0_9 = arith.constant 0 : index
    %12 = vector.load %arg5[%c0_8, %c0_9] : memref<392x32xbf16, #tpu.memory_space<vmem>>, vector<392x32xbf16>
    tpu.vector_store %arg5[%c0_8, %c0_9], %11 {strides = array<i32>} : memref<392x32xbf16, #tpu.memory_space<vmem>>, vector<392x32xbf16>,
    return
  }
  func.func @transform_0(%arg0: i32) -> (i32, i32) {
    %c0_i32 = arith.constant 0 : i32
    %c0_i32_0 = arith.constant 0 : i32
    return %arg0, %c0_i32 : i32, i32
  }
  func.func @transform_1(%arg0: i32) -> (i32, i32) {
    %c0_i32 = arith.constant 0 : i32
    %c0_i32_0 = arith.constant 0 : i32
    %c0_i32_1 = arith.constant 0 : i32
    return %c0_i32, %c0_i32_0 : i32, i32
  }
  func.func @transform_2(%arg0: i32) -> (i32, i32) {
    %c0_i32 = arith.constant 0 : i32
    %c0_i32_0 = arith.constant 0 : i32
    %c0_i32_1 = arith.constant 0 : i32
    return %c0_i32, %c0_i32_0 : i32, i32
  }
  func.func @transform_3(%arg0: i32) -> (i32, i32) {
    %c0_i32 = arith.constant 0 : i32
    %c0_i32_0 = arith.constant 0 : i32
    %c0_i32_1 = arith.constant 0 : i32
    return %c0_i32, %c0_i32_0 : i32, i32
  }
  func.func @transform_4(%arg0: i32) -> (i32, i32) {
    %c0_i32 = arith.constant 0 : i32
    %c0_i32_0 = arith.constant 0 : i32
    return %arg0, %c0_i32 : i32, i32
  }
}

</mosaic_0001>

<llo_original>
// kernel: tpu_custom_call.1
$region0: #{tpu_custom_call.1}
  #allocation0 [shape = 'u32[]', space=smem, size = 0x4, offset = 0x4, fixed_abs, tag = 'smem constant byte address 0x4 - core index']
  #allocation1 [shape = 'u32[144,128]{1,0:T(1,128)}', space=vmem, size = 0x12000, scoped, tag = 'internal scratch']
  %s0 = inlined_call_operand.hbm [shape: bf16[392,256], index: 0, kind: input, shape index: {}]
  %s1 = inlined_call_operand.vmem [shape: bf16[256,32], index: 1, kind: input, shape index: {}]
  %s2 = inlined_call_operand.vmem [shape: f32[1,32], index: 2, kind: input, shape index: {}]
  %s3 = inlined_call_operand.vmem [shape: f32[1,32], index: 3, kind: input, shape index: {}]
  %s4 = inlined_call_operand.vmem [shape: bf16[392,32], index: 4, kind: output, shape index: {}]
  %s5 = sld [smem:[#allocation0]]
  $region30: #{tpu_custom_call.1} parent=0
    _
  %s7 = ssub.s32 1, %s5
  %s8 = scalar_select 0, %s7, %s5
  $region1: #{tpu_custom_call.1} parent=0
    #allocation2 [shape = 'u8[200704]{0}', space=vmem, size = 0x31000, scoped, tag = 'input window, operand 0, single buffered']
    #allocation3 [shape = 's32[1]{0}', space=sflag, size = 0x4, scoped, tag = 'scoped memory for tpu_custom_call.1']
    %9 = vsyncpa [#allocation3], 0
    // Predicated region
    $region2: #{tpu_custom_call.1} parent=1 // pred_check
      _
    $region3: #{tpu_custom_call.1} parent=1 // pred_check_branch
      %11 = sbr.rel (0) target = $region5
    $region4: #{tpu_custom_call.1} parent=1 // pred_region
      %s13 = ssub.s32 6272, 6272
      %14 = vsyncadd [#allocation3], %s13
      %s15 = sshll.u32 [#allocation2], 4
      %s16 = int_to_ptr.vmem [resolvable:$true] %s15
      %21 = dma.hbm_to_vmem [thread:$0]  %s0, 6272, %s16, [#allocation3], 128, 128, 8
    $region5: #{tpu_custom_call.1} parent=1 // pred_fallthru
      _
    // Predicated region
    $region6: #{tpu_custom_call.1} parent=1 // pred_check
      _
    $region7: #{tpu_custom_call.1} parent=1 // pred_check_branch
      %23 = sbr.rel (0) target = $region9
    $region8: #{tpu_custom_call.1} parent=1 // pred_region
      _
    $region9: #{tpu_custom_call.1} parent=1 // pred_fallthru
      _
    // Predicated region
    $region10: #{tpu_custom_call.1} parent=1 // pred_check
      _
    $region11: #{tpu_custom_call.1} parent=1 // pred_check_branch
      %25 = sbr.rel (0) target = $region13
    $region12: #{tpu_custom_call.1} parent=1 // pred_region
      _
    $region13: #{tpu_custom_call.1} parent=1 // pred_fallthru
      _
    // Predicated region
    $region14: #{tpu_custom_call.1} parent=1 // pred_check
      _
    $region15: #{tpu_custom_call.1} parent=1 // pred_check_branch
      %27 = sbr.rel (0) target = $region17
    $region16: #{tpu_custom_call.1} parent=1 // pred_region
      _
    $region17: #{tpu_custom_call.1} parent=1 // pred_fallthru
      _
    // Predicated region
    $region18: #{tpu_custom_call.1} parent=1 // pred_check
      _
    $region19: #{tpu_custom_call.1} parent=1 // pred_check_branch
      %29 = sbr.rel (0) target = $region21
    $region20: #{tpu_custom_call.1} parent=1 // pred_region
      %30 = dma.done [#allocation3], 6272
    $region21: #{tpu_custom_call.1} parent=1 // pred_fallthru
      _
    %v32 = vld [vmem:[#allocation2] sm:$0xff]
    %v33 = vld [vmem:[#allocation2 + $0x8] sm:$0xff]
    %v34 = vld [vmem:[#allocation2 + $0x10] sm:$0xff]
    %v35 = vld [vmem:[#allocation2 + $0x18] sm:$0xff]
    %v36 = vld [vmem:[#allocation2 + $0x20] sm:$0xff]
    %v37 = vld [vmem:[#allocation2 + $0x28] sm:$0xff]
    %v38 = vld [vmem:[#allocation2 + $0x30] sm:$0xff]
    %v39 = vld [vmem:[#allocation2 + $0x38] sm:$0xff]
    %v40 = vld [vmem:[#allocation2 + $0x40] sm:$0xff]
    %v41 = vld [vmem:[#allocation2 + $0x48] sm:$0xff]
    %v42 = vld [vmem:[#allocation2 + $0x50] sm:$0xff]
    %v43 = vld [vmem:[#allocation2 + $0x58] sm:$0xff]
    %v44 = vld [vmem:[#allocation2 + $0x60] sm:$0xff]
    %v45 = vld [vmem:[#allocation2 + $0x68] sm:$0xff]
    %v46 = vld [vmem:[#allocation2 + $0x70] sm:$0xff]
    %v47 = vld [vmem:[#allocation2 + $0x78] sm:$0xff]
    %v48 = vld [vmem:[#allocation2 + $0x80] sm:$0xff]
    %v49 = vld [vmem:[#allocation2 + $0x88] sm:$0xff]
    %v50 = vld [vmem:[#allocation2 + $0x90] sm:$0xff]
    %v51 = vld [vmem:[#allocation2 + $0x98] sm:$0xff]
    %v52 = vld [vmem:[#allocation2 + $0xa0] sm:$0xff]
    %v53 = vld [vmem:[#allocation2 + $0xa8] sm:$0xff]
    %v54 = vld [vmem:[#allocation2 + $0xb0] sm:$0xff]
    %v55 = vld [vmem:[#allocation2 + $0xb8] sm:$0xff]
    %v56 = vld [vmem:[#allocation2 + $0xc0] sm:$0xff]
    %v57 = vld [vmem:[#allocation2 + $0xc8] sm:$0xff]
    %v58 = vld [vmem:[#allocation2 + $0xd0] sm:$0xff]
    %v59 = vld [vmem:[#allocation2 + $0xd8] sm:$0xff]
    %v60 = vld [vmem:[#allocation2 + $0xe0] sm:$0xff]
    %v61 = vld [vmem:[#allocation2 + $0xe8] sm:$0xff]
    %v62 = vld [vmem:[#allocation2 + $0xf0] sm:$0xff]
    %v63 = vld [vmem:[#allocation2 + $0xf8] sm:$0xff]
    %v64 = vld [vmem:[#allocation2 + $0x100] sm:$0xff]
    %v65 = vld [vmem:[#allocation2 + $0x108] sm:$0xff]
    %v66 = vld [vmem:[#allocation2 + $0x110] sm:$0xff]
    %v67 = vld [vmem:[#allocation2 + $0x118] sm:$0xff]
    %v68 = vld [vmem:[#allocation2 + $0x120] sm:$0xff]
    %v69 = vld [vmem:[#allocation2 + $0x128] sm:$0xff]
    %v70 = vld [vmem:[#allocation2 + $0x130] sm:$0xff]
    %v71 = vld [vmem:[#allocation2 + $0x138] sm:$0xff]
    %v72 = vld [vmem:[#allocation2 + $0x140] sm:$0xff]
    %v73 = vld [vmem:[#allocation2 + $0x148] sm:$0xff]
    %v74 = vld [vmem:[#allocation2 + $0x150] sm:$0xff]
    %v75 = vld [vmem:[#allocation2 + $0x158] sm:$0xff]
    %v76 = vld [vmem:[#allocation2 + $0x160] sm:$0xff]
    %v77 = vld [vmem:[#allocation2 + $0x168] sm:$0xff]
    %v78 = vld [vmem:[#allocation2 + $0x170] sm:$0xff]
    %v79 = vld [vmem:[#allocation2 + $0x178] sm:$0xff]
    %v80 = vld [vmem:[#allocation2 + $0x180] sm:$0xff]
    %v81 = vld [vmem:[%s1] sm:$0xf]
    %v82 = vld [vmem:[%s1 + $0x4] sm:$0xf]
    %v83 = vld [vmem:[%s1 + $0x8] sm:$0xf]
    %v84 = vld [vmem:[%s1 + $0xc] sm:$0xf]
    %v85 = vld [vmem:[%s1 + $0x10] sm:$0xf]
    %v86 = vld [vmem:[%s1 + $0x14] sm:$0xf]
    %v87 = vld [vmem:[%s1 + $0x18] sm:$0xf]
    %v88 = vld [vmem:[%s1 + $0x1c] sm:$0xf]
    %v89 = vld [vmem:[%s1 + $0x20] sm:$0xf]
    %v90 = vld [vmem:[%s1 + $0x24] sm:$0xf]
    %v91 = vld [vmem:[%s1 + $0x28] sm:$0xf]
    %v92 = vld [vmem:[%s1 + $0x2c] sm:$0xf]
    %v93 = vld [vmem:[%s1 + $0x30] sm:$0xf]
    %v94 = vld [vmem:[%s1 + $0x34] sm:$0xf]
    %v95 = vld [vmem:[%s1 + $0x38] sm:$0xf]
    %v96 = vld [vmem:[%s1 + $0x3c] sm:$0xf]
    %v97 = vld [vmem:[%s1 + $0x40] sm:$0xf]
    %v98 = vld [vmem:[%s1 + $0x44] sm:$0xf]
    %v99 = vld [vmem:[%s1 + $0x48] sm:$0xf]
    %v100 = vld [vmem:[%s1 + $0x4c] sm:$0xf]
    %v101 = vld [vmem:[%s1 + $0x50] sm:$0xf]
    %v102 = vld [vmem:[%s1 + $0x54] sm:$0xf]
    %v103 = vld [vmem:[%s1 + $0x58] sm:$0xf]
    %v104 = vld [vmem:[%s1 + $0x5c] sm:$0xf]
    %v105 = vld [vmem:[%s1 + $0x60] sm:$0xf]
    %v106 = vld [vmem:[%s1 + $0x64] sm:$0xf]
    %v107 = vld [vmem:[%s1 + $0x68] sm:$0xf]
    %v108 = vld [vmem:[%s1 + $0x6c] sm:$0xf]
    %v109 = vld [vmem:[%s1 + $0x70] sm:$0xf]
    %v110 = vld [vmem:[%s1 + $0x74] sm:$0xf]
    %v111 = vld [vmem:[%s1 + $0x78] sm:$0xf]
    %v112 = vld [vmem:[%s1 + $0x7c] sm:$0xf]
    %v162 = vunpack.c.l.b16 %v32
    %v163 = vunpack.c.h.b16 %v32
    %v164 = vunpack.c.l.b16 %v33
    %v165 = vunpack.c.h.b16 %v33
    %v166 = vunpack.c.l.b16 %v34
    %v167 = vunpack.c.h.b16 %v34
    %v168 = vunpack.c.l.b16 %v35
    %v169 = vunpack.c.h.b16 %v35
    %v170 = vunpack.c.l.b16 %v36
    %v171 = vunpack.c.h.b16 %v36
    %v172 = vunpack.c.l.b16 %v37
    %v173 = vunpack.c.h.b16 %v37
    %v174 = vunpack.c.l.b16 %v38
    %v175 = vunpack.c.h.b16 %v38
    %v176 = vunpack.c.l.b16 %v39
    %v177 = vunpack.c.h.b16 %v39
    %v178 = vunpack.c.l.b16 %v40
    %v179 = vunpack.c.h.b16 %v40
    %v180 = vunpack.c.l.b16 %v41
    %v181 = vunpack.c.h.b16 %v41
    %v182 = vunpack.c.l.b16 %v42
    %v183 = vunpack.c.h.b16 %v42
    %v184 = vunpack.c.l.b16 %v43
    %v185 = vunpack.c.h.b16 %v43
    %v186 = vunpack.c.l.b16 %v44
    %v187 = vunpack.c.h.b16 %v44
    %v188 = vunpack.c.l.b16 %v45
    %v189 = vunpack.c.h.b16 %v45
    %v190 = vunpack.c.l.b16 %v46
    %v191 = vunpack.c.h.b16 %v46
    %v192 = vunpack.c.l.b16 %v47
    %v193 = vunpack.c.h.b16 %v47
    %v194 = vunpack.c.l.b16 %v48
    %v195 = vunpack.c.h.b16 %v48
    %v196 = vunpack.c.l.b16 %v49
    %v197 = vunpack.c.h.b16 %v49
    %v198 = vunpack.c.l.b16 %v50
    %v199 = vunpack.c.h.b16 %v50
    %v200 = vunpack.c.l.b16 %v51
    %v201 = vunpack.c.h.b16 %v51
    %v202 = vunpack.c.l.b16 %v52
    %v203 = vunpack.c.h.b16 %v52
    %v204 = vunpack.c.l.b16 %v53
    %v205 = vunpack.c.h.b16 %v53
    %v206 = vunpack.c.l.b16 %v54
    %v207 = vunpack.c.h.b16 %v54
    %v208 = vunpack.c.l.b16 %v55
    %v209 = vunpack.c.h.b16 %v55
    %v210 = vunpack.c.l.b16 %v56
    %v211 = vunpack.c.h.b16 %v56
    %v212 = vunpack.c.l.b16 %v57
    %v213 = vunpack.c.h.b16 %v57
    %v214 = vunpack.c.l.b16 %v58
    %v215 = vunpack.c.h.b16 %v58
    %v216 = vunpack.c.l.b16 %v59
    %v217 = vunpack.c.h.b16 %v59
    %v218 = vunpack.c.l.b16 %v60
    %v219 = vunpack.c.h.b16 %v60
    %v220 = vunpack.c.l.b16 %v61
    %v221 = vunpack.c.h.b16 %v61
    %v222 = vunpack.c.l.b16 %v62
    %v223 = vunpack.c.h.b16 %v62
    %v224 = vunpack.c.l.b16 %v63
    %v225 = vunpack.c.h.b16 %v63
    %v226 = vunpack.c.l.b16 %v64
    %v227 = vunpack.c.h.b16 %v64
    %v228 = vunpack.c.l.b16 %v65
    %v229 = vunpack.c.h.b16 %v65
    %v230 = vunpack.c.l.b16 %v66
    %v231 = vunpack.c.h.b16 %v66
    %v232 = vunpack.c.l.b16 %v67
    %v233 = vunpack.c.h.b16 %v67
    %v234 = vunpack.c.l.b16 %v68
    %v235 = vunpack.c.h.b16 %v68
    %v236 = vunpack.c.l.b16 %v69
    %v237 = vunpack.c.h.b16 %v69
    %v238 = vunpack.c.l.b16 %v70
    %v239 = vunpack.c.h.b16 %v70
    %v240 = vunpack.c.l.b16 %v71
    %v241 = vunpack.c.h.b16 %v71
    %v242 = vunpack.c.l.b16 %v72
    %v243 = vunpack.c.h.b16 %v72
    %v244 = vunpack.c.l.b16 %v73
    %v245 = vunpack.c.h.b16 %v73
    %v246 = vunpack.c.l.b16 %v74
    %v247 = vunpack.c.h.b16 %v74
    %v248 = vunpack.c.l.b16 %v75
    %v249 = vunpack.c.h.b16 %v75
    %v250 = vunpack.c.l.b16 %v76
    %v251 = vunpack.c.h.b16 %v76
    %v252 = vunpack.c.l.b16 %v77
    %v253 = vunpack.c.h.b16 %v77
    %v254 = vunpack.c.l.b16 %v78
    %v255 = vunpack.c.h.b16 %v78
    %v256 = vunpack.c.l.b16 %v79
    %v257 = vunpack.c.h.b16 %v79
    %v258 = vunpack.c.l.b16 %v80
    %v259 = vunpack.c.h.b16 %v80
    %v260 = vpack.c.b16 %v164, %v162
    %v261 = vpack.c.b16 %v165, %v163
    %v262 = vpack.c.b16 %v168, %v166
    %v263 = vpack.c.b16 %v169, %v167
    %v264 = vpack.c.b16 %v172, %v170
    %v265 = vpack.c.b16 %v173, %v171
    %v266 = vpack.c.b16 %v176, %v174
    %v267 = vpack.c.b16 %v177, %v175
    %v268 = vpack.c.b16 %v180, %v178
    %v269 = vpack.c.b16 %v181, %v179
    %v270 = vpack.c.b16 %v184, %v182
    %v271 = vpack.c.b16 %v185, %v183
    %v272 = vpack.c.b16 %v188, %v186
    %v273 = vpack.c.b16 %v189, %v187
    %v274 = vpack.c.b16 %v192, %v190
    %v275 = vpack.c.b16 %v193, %v191
    %v276 = vpack.c.b16 %v196, %v194
    %v277 = vpack.c.b16 %v197, %v195
    %v278 = vpack.c.b16 %v200, %v198
    %v279 = vpack.c.b16 %v201, %v199
    %v280 = vpack.c.b16 %v204, %v202
    %v281 = vpack.c.b16 %v205, %v203
    %v282 = vpack.c.b16 %v208, %v206
    %v283 = vpack.c.b16 %v209, %v207
    %v284 = vpack.c.b16 %v212, %v210
    %v285 = vpack.c.b16 %v213, %v211
    %v286 = vpack.c.b16 %v216, %v214
    %v287 = vpack.c.b16 %v217, %v215
    %v288 = vpack.c.b16 %v220, %v218
    %v289 = vpack.c.b16 %v221, %v219
    %v290 = vpack.c.b16 %v224, %v222
    %v291 = vpack.c.b16 %v225, %v223
    %v292 = vpack.c.b16 %v228, %v226
    %v293 = vpack.c.b16 %v229, %v227
    %v294 = vpack.c.b16 %v232, %v230
    %v295 = vpack.c.b16 %v233, %v231
    %v296 = vpack.c.b16 %v236, %v234
    %v297 = vpack.c.b16 %v237, %v235
    %v298 = vpack.c.b16 %v240, %v238
    %v299 = vpack.c.b16 %v241, %v239
    %v300 = vpack.c.b16 %v244, %v242
    %v301 = vpack.c.b16 %v245, %v243
    %v302 = vpack.c.b16 %v248, %v246
    %v303 = vpack.c.b16 %v249, %v247
    %v304 = vpack.c.b16 %v252, %v250
    %v305 = vpack.c.b16 %v253, %v251
    %v306 = vpack.c.b16 %v256, %v254
    %v307 = vpack.c.b16 %v257, %v255
    %v308 = vpack.c.b16 %v258, %v258
    %v309 = vpack.c.b16 %v259, %v259
    %v392 = vunpack.c.l.b16 %v81
    %v393 = vunpack.c.l.b16 %v82
    %v394 = vunpack.c.l.b16 %v83
    %v395 = vunpack.c.l.b16 %v84
    %v396 = vunpack.c.l.b16 %v85
    %v397 = vunpack.c.l.b16 %v86
    %v398 = vunpack.c.l.b16 %v87
    %v399 = vunpack.c.l.b16 %v88
    %v400 = vunpack.c.l.b16 %v89
    %v401 = vunpack.c.l.b16 %v90
    %v402 = vunpack.c.l.b16 %v91
    %v403 = vunpack.c.l.b16 %v92
    %v404 = vunpack.c.l.b16 %v93
    %v405 = vunpack.c.l.b16 %v94
    %v406 = vunpack.c.l.b16 %v95
    %v407 = vunpack.c.l.b16 %v96
    %v408 = vunpack.c.l.b16 %v97
    %v409 = vunpack.c.l.b16 %v98
    %v410 = vunpack.c.l.b16 %v99
    %v411 = vunpack.c.l.b16 %v100
    %v412 = vunpack.c.l.b16 %v101
    %v413 = vunpack.c.l.b16 %v102
    %v414 = vunpack.c.l.b16 %v103
    %v415 = vunpack.c.l.b16 %v104
    %v416 = vunpack.c.l.b16 %v105
    %v417 = vunpack.c.l.b16 %v106
    %v418 = vunpack.c.l.b16 %v107
    %v419 = vunpack.c.l.b16 %v108
    %v420 = vunpack.c.l.b16 %v109
    %v421 = vunpack.c.l.b16 %v110
    %v422 = vunpack.c.l.b16 %v111
    %v423 = vunpack.c.l.b16 %v112
    %v424 = vpack.c.b16 %v393, %v392
    %v425 = vpack.c.b16 %v395, %v394
    %v426 = vpack.c.b16 %v397, %v396
    %v427 = vpack.c.b16 %v399, %v398
    %v428 = vpack.c.b16 %v401, %v400
    %v429 = vpack.c.b16 %v403, %v402
    %v430 = vpack.c.b16 %v405, %v404
    %v431 = vpack.c.b16 %v407, %v406
    %v432 = vpack.c.b16 %v409, %v408
    %v433 = vpack.c.b16 %v411, %v410
    %v434 = vpack.c.b16 %v413, %v412
    %v435 = vpack.c.b16 %v415, %v414
    %v436 = vpack.c.b16 %v417, %v416
    %v437 = vpack.c.b16 %v419, %v418
    %v438 = vpack.c.b16 %v421, %v420
    %v439 = vpack.c.b16 %v423, %v422
    %456 = vmatprep.subr.bf16.mxu0 0
    %457 = vmatpush1.bf16.msra.mxu0 %v431
    %458 = vmatprep.subr.bf16.mxu0 0
    %459 = vmatpush1.bf16.msra.mxu0 %v430
    %460 = vmatprep.subr.bf16.mxu0 0
    %461 = vmatpush1.bf16.msra.mxu0 %v429
    %462 = vmatprep.subr.bf16.mxu0 0
    %463 = vmatpush1.bf16.msra.mxu0 %v428
    %464 = vmatprep.subr.bf16.mxu0 0
    %465 = vmatpush1.bf16.msra.mxu0 %v427
    %466 = vmatprep.subr.bf16.mxu0 0
    %467 = vmatpush1.bf16.msra.mxu0 %v426
    %468 = vmatprep.subr.bf16.mxu0 0
    %469 = vmatpush1.bf16.msra.mxu0 %v425
    %470 = vmatprep.subr.bf16.mxu0 0
    %471 = vmatpush1.bf16.msra.mxu0 %v424
    %472 = vmatprep.subr.bf16.mxu0 0
    %473 = vmatpush2.bf16.msra.mxu0 %v439
    %474 = vmatprep.subr.bf16.mxu0 0
    %475 = vmatpush2.bf16.msra.mxu0 %v438
    %476 = vmatprep.subr.bf16.mxu0 0
    %477 = vmatpush2.bf16.msra.mxu0 %v437
    %478 = vmatprep.subr.bf16.mxu0 0
    %479 = vmatpush2.bf16.msra.mxu0 %v436
    %480 = vmatprep.subr.bf16.mxu0 0
    %481 = vmatpush2.bf16.msra.mxu0 %v435
    %482 = vmatprep.subr.bf16.mxu0 0
    %483 = vmatpush2.bf16.msra.mxu0 %v434
    %484 = vmatprep.subr.bf16.mxu0 0
    %485 = vmatpush2.bf16.msra.mxu0 %v433
    %486 = vmatprep.subr.bf16.mxu0 0
    %487 = vmatpush2.bf16.msra.mxu0 %v432
    %488 = vmatprep.mubr.bf16.mxu0 %v261
    %489 = vmatmul.mubr.bf16.gmra.mxu0 %v260
    %v490 = vpop.f32.mrf.mxu0
    %v491 = vadd.f32 0.0, %v490
    %v492 = vpop.f32.mrf.mxu0
    %v493 = vpop.f32.mrf.mxu0
    %v494 = vadd.f32 0.0, %v493
    %v495 = vpop.f32.mrf.mxu0
    %496 = vmatprep.mubr.bf16.mxu0 %v263
    %497 = vmatmul.mubr.bf16.gmra.mxu0 %v262
    %v498 = vpop.f32.mrf.mxu0
    %v499 = vadd.f32 0.0, %v498
    %v500 = vpop.f32.mrf.mxu0
    %v501 = vpop.f32.mrf.mxu0
    %v502 = vadd.f32 0.0, %v501
    %v503 = vpop.f32.mrf.mxu0
    %504 = vmatprep.mubr.bf16.mxu0 %v265
    %505 = vmatmul.mubr.bf16.gmra.mxu0 %v264
    %v506 = vpop.f32.mrf.mxu0
    %v507 = vadd.f32 0.0, %v506
    %v508 = vpop.f32.mrf.mxu0
    %v509 = vpop.f32.mrf.mxu0
    %v510 = vadd.f32 0.0, %v509
    %v511 = vpop.f32.mrf.mxu0
    %512 = vmatprep.mubr.bf16.mxu0 %v267
    %513 = vmatmul.mubr.bf16.gmra.mxu0 %v266
    %v514 = vpop.f32.mrf.mxu0
    %v515 = vadd.f32 0.0, %v514
    %v516 = vpop.f32.mrf.mxu0
    %v517 = vpop.f32.mrf.mxu0
    %v518 = vadd.f32 0.0, %v517
    %v519 = vpop.f32.mrf.mxu0
    %520 = vmatprep.mubr.bf16.mxu0 %v269
    %521 = vmatmul.mubr.bf16.gmra.mxu0 %v268
    %v522 = vpop.f32.mrf.mxu0
    %v523 = vadd.f32 0.0, %v522
    %v524 = vpop.f32.mrf.mxu0
    %v525 = vpop.f32.mrf.mxu0
    %v526 = vadd.f32 0.0, %v525
    %v527 = vpop.f32.mrf.mxu0
    %528 = vmatprep.mubr.bf16.mxu0 %v271
    %529 = vmatmul.mubr.bf16.gmra.mxu0 %v270
    %v530 = vpop.f32.mrf.mxu0
    %v531 = vadd.f32 0.0, %v530
    %v532 = vpop.f32.mrf.mxu0
    %v533 = vpop.f32.mrf.mxu0
    %v534 = vadd.f32 0.0, %v533
    %v535 = vpop.f32.mrf.mxu0
    %536 = vmatprep.mubr.bf16.mxu0 %v273
    %537 = vmatmul.mubr.bf16.gmra.mxu0 %v272
    %v538 = vpop.f32.mrf.mxu0
    %v539 = vadd.f32 0.0, %v538
    %v540 = vpop.f32.mrf.mxu0
    %v541 = vpop.f32.mrf.mxu0
    %v542 = vadd.f32 0.0, %v541
    %v543 = vpop.f32.mrf.mxu0
    %544 = vmatprep.mubr.bf16.mxu0 %v275
    %545 = vmatmul.mubr.bf16.gmra.mxu0 %v274
    %v546 = vpop.f32.mrf.mxu0
    %v547 = vadd.f32 0.0, %v546
    %v548 = vpop.f32.mrf.mxu0
    %v549 = vpop.f32.mrf.mxu0
    %v550 = vadd.f32 0.0, %v549
    %v551 = vpop.f32.mrf.mxu0
    %552 = vmatprep.mubr.bf16.mxu0 %v277
    %553 = vmatmul.mubr.bf16.gmra.mxu0 %v276
    %v554 = vpop.f32.mrf.mxu0
    %v555 = vadd.f32 0.0, %v554
    %v556 = vpop.f32.mrf.mxu0
    %v557 = vpop.f32.mrf.mxu0
    %v558 = vadd.f32 0.0, %v557
    %v559 = vpop.f32.mrf.mxu0
    %560 = vmatprep.mubr.bf16.mxu0 %v279
    %561 = vmatmul.mubr.bf16.gmra.mxu0 %v278
    %v562 = vpop.f32.mrf.mxu0
    %v563 = vadd.f32 0.0, %v562
    %v564 = vpop.f32.mrf.mxu0
    %v565 = vpop.f32.mrf.mxu0
    %v566 = vadd.f32 0.0, %v565
    %v567 = vpop.f32.mrf.mxu0
    %568 = vmatprep.mubr.bf16.mxu0 %v281
    %569 = vmatmul.mubr.bf16.gmra.mxu0 %v280
    %v570 = vpop.f32.mrf.mxu0
    %v571 = vadd.f32 0.0, %v570
    %v572 = vpop.f32.mrf.mxu0
    %v573 = vpop.f32.mrf.mxu0
    %v574 = vadd.f32 0.0, %v573
    %v575 = vpop.f32.mrf.mxu0
    %576 = vmatprep.mubr.bf16.mxu0 %v283
    %577 = vmatmul.mubr.bf16.gmra.mxu0 %v282
    %v578 = vpop.f32.mrf.mxu0
    %v579 = vadd.f32 0.0, %v578
    %v580 = vpop.f32.mrf.mxu0
    %v581 = vpop.f32.mrf.mxu0
    %v582 = vadd.f32 0.0, %v581
    %v583 = vpop.f32.mrf.mxu0
    %584 = vmatprep.mubr.bf16.mxu0 %v285
    %585 = vmatmul.mubr.bf16.gmra.mxu0 %v284
    %v586 = vpop.f32.mrf.mxu0
    %v587 = vadd.f32 0.0, %v586
    %v588 = vpop.f32.mrf.mxu0
    %v589 = vpop.f32.mrf.mxu0
    %v590 = vadd.f32 0.0, %v589
    %v591 = vpop.f32.mrf.mxu0
    %592 = vmatprep.mubr.bf16.mxu0 %v287
    %593 = vmatmul.mubr.bf16.gmra.mxu0 %v286
    %v594 = vpop.f32.mrf.mxu0
    %v595 = vadd.f32 0.0, %v594
    %v596 = vpop.f32.mrf.mxu0
    %v597 = vpop.f32.mrf.mxu0
    %v598 = vadd.f32 0.0, %v597
    %v599 = vpop.f32.mrf.mxu0
    %600 = vmatprep.mubr.bf16.mxu0 %v289
    %601 = vmatmul.mubr.bf16.gmra.mxu0 %v288
    %v602 = vpop.f32.mrf.mxu0
    %v603 = vadd.f32 0.0, %v602
    %v604 = vpop.f32.mrf.mxu0
    %v605 = vpop.f32.mrf.mxu0
    %v606 = vadd.f32 0.0, %v605
    %v607 = vpop.f32.mrf.mxu0
    %608 = vmatprep.mubr.bf16.mxu0 %v291
    %609 = vmatmul.mubr.bf16.gmra.mxu0 %v290
    %v610 = vpop.f32.mrf.mxu0
    %v611 = vadd.f32 0.0, %v610
    %v612 = vpop.f32.mrf.mxu0
    %v613 = vpop.f32.mrf.mxu0
    %v614 = vadd.f32 0.0, %v613
    %v615 = vpop.f32.mrf.mxu0
    %616 = vmatprep.mubr.bf16.mxu0 %v293
    %617 = vmatmul.mubr.bf16.gmra.mxu0 %v292
    %v618 = vpop.f32.mrf.mxu0
    %v619 = vadd.f32 0.0, %v618
    %v620 = vpop.f32.mrf.mxu0
    %v621 = vpop.f32.mrf.mxu0
    %v622 = vadd.f32 0.0, %v621
    %v623 = vpop.f32.mrf.mxu0
    %624 = vmatprep.mubr.bf16.mxu0 %v295
    %625 = vmatmul.mubr.bf16.gmra.mxu0 %v294
    %v626 = vpop.f32.mrf.mxu0
    %v627 = vadd.f32 0.0, %v626
    %v628 = vpop.f32.mrf.mxu0
    %v629 = vpop.f32.mrf.mxu0
    %v630 = vadd.f32 0.0, %v629
    %v631 = vpop.f32.mrf.mxu0
    %632 = vmatprep.mubr.bf16.mxu0 %v297
    %633 = vmatmul.mubr.bf16.gmra.mxu0 %v296
    %v634 = vpop.f32.mrf.mxu0
    %v635 = vadd.f32 0.0, %v634
    %v636 = vpop.f32.mrf.mxu0
    %v637 = vpop.f32.mrf.mxu0
    %v638 = vadd.f32 0.0, %v637
    %v639 = vpop.f32.mrf.mxu0
    %640 = vmatprep.mubr.bf16.mxu0 %v299
    %641 = vmatmul.mubr.bf16.gmra.mxu0 %v298
    %v642 = vpop.f32.mrf.mxu0
    %v643 = vadd.f32 0.0, %v642
    %v644 = vpop.f32.mrf.mxu0
    %v645 = vpop.f32.mrf.mxu0
    %v646 = vadd.f32 0.0, %v645
    %v647 = vpop.f32.mrf.mxu0
    %648 = vmatprep.mubr.bf16.mxu0 %v301
    %649 = vmatmul.mubr.bf16.gmra.mxu0 %v300
    %v650 = vpop.f32.mrf.mxu0
    %v651 = vadd.f32 0.0, %v650
    %v652 = vpop.f32.mrf.mxu0
    %v653 = vpop.f32.mrf.mxu0
    %v654 = vadd.f32 0.0, %v653
    %v655 = vpop.f32.mrf.mxu0
    %656 = vmatprep.mubr.bf16.mxu0 %v303
    %657 = vmatmul.mubr.bf16.gmra.mxu0 %v302
    %v658 = vpop.f32.mrf.mxu0
    %v659 = vadd.f32 0.0, %v658
    %v660 = vpop.f32.mrf.mxu0
    %v661 = vpop.f32.mrf.mxu0
    %v662 = vadd.f32 0.0, %v661
    %v663 = vpop.f32.mrf.mxu0
    %664 = vmatprep.mubr.bf16.mxu0 %v305
    %665 = vmatmul.mubr.bf16.gmra.mxu0 %v304
    %v666 = vpop.f32.mrf.mxu0
    %v667 = vadd.f32 0.0, %v666
    %v668 = vpop.f32.mrf.mxu0
    %v669 = vpop.f32.mrf.mxu0
    %v670 = vadd.f32 0.0, %v669
    %v671 = vpop.f32.mrf.mxu0
    %672 = vmatprep.mubr.bf16.mxu0 %v307
    %673 = vmatmul.mubr.bf16.gmra.mxu0 %v306
    %v674 = vpop.f32.mrf.mxu0
    %v675 = vadd.f32 0.0, %v674
    %v676 = vpop.f32.mrf.mxu0
    %v677 = vpop.f32.mrf.mxu0
    %v678 = vadd.f32 0.0, %v677
    %v679 = vpop.f32.mrf.mxu0
    %680 = vmatprep.mubr.bf16.mxu0 %v309
    %681 = vmatmul.mubr.bf16.gmra.mxu0 %v308
    %v682 = vpop.f32.mrf.mxu0
    %v683 = vadd.f32 0.0, %v682
    %v684 = vpop.f32.mrf.mxu0
    %v685 = vpop.f32.mrf.mxu0
    %v686 = vpop.f32.mrf.mxu0
    %687 = vdwg.mxu0
    %v688 = vld [vmem:[%s2] sm:$0x1]
    %v690 = vlaneseq
    %v691 = vshrl.u32 %v690, 7
    %v692 = vsub.s32 0, %v691
    %v693 = vrot.slane %v688, %v692
    %v695 = vmul.f32 %v491, %v693
    %v696 = vmul.f32 %v494, %v693
    %v697 = vmul.f32 %v499, %v693
    %v698 = vmul.f32 %v502, %v693
    %v699 = vmul.f32 %v507, %v693
    %v700 = vmul.f32 %v510, %v693
    %v701 = vmul.f32 %v515, %v693
    %v702 = vmul.f32 %v518, %v693
    %v703 = vmul.f32 %v523, %v693
    %v704 = vmul.f32 %v526, %v693
    %v705 = vmul.f32 %v531, %v693
    %v706 = vmul.f32 %v534, %v693
    %v707 = vmul.f32 %v539, %v693
    %v708 = vmul.f32 %v542, %v693
    %v709 = vmul.f32 %v547, %v693
    %v710 = vmul.f32 %v550, %v693
    %v711 = vmul.f32 %v555, %v693
    %v712 = vmul.f32 %v558, %v693
    %v713 = vmul.f32 %v563, %v693
    %v714 = vmul.f32 %v566, %v693
    %v715 = vmul.f32 %v571, %v693
    %v716 = vmul.f32 %v574, %v693
    %v717 = vmul.f32 %v579, %v693
    %v718 = vmul.f32 %v582, %v693
    %v719 = vmul.f32 %v587, %v693
    %v720 = vmul.f32 %v590, %v693
    %v721 = vmul.f32 %v595, %v693
    %v722 = vmul.f32 %v598, %v693
    %v723 = vmul.f32 %v603, %v693
    %v724 = vmul.f32 %v606, %v693
    %v725 = vmul.f32 %v611, %v693
    %v726 = vmul.f32 %v614, %v693
    %v727 = vmul.f32 %v619, %v693
    %v728 = vmul.f32 %v622, %v693
    %v729 = vmul.f32 %v627, %v693
    %v730 = vmul.f32 %v630, %v693
    %v731 = vmul.f32 %v635, %v693
    %v732 = vmul.f32 %v638, %v693
    %v733 = vmul.f32 %v643, %v693
    %v734 = vmul.f32 %v646, %v693
    %v735 = vmul.f32 %v651, %v693
    %v736 = vmul.f32 %v654, %v693
    %v737 = vmul.f32 %v659, %v693
    %v738 = vmul.f32 %v662, %v693
    %v739 = vmul.f32 %v667, %v693
    %v740 = vmul.f32 %v670, %v693
    %v741 = vmul.f32 %v675, %v693
    %v742 = vmul.f32 %v678, %v693
    %v743 = vmul.f32 %v683, %v693
    %v744 = vld [vmem:[%s3] sm:$0x1]
    %v746 = vlaneseq
    %v747 = vshrl.u32 %v746, 7
    %v748 = vsub.s32 0, %v747
    %v749 = vrot.slane %v744, %v748
    %v751 = vadd.f32 %v695, %v749
    %v752 = vadd.f32 %v696, %v749
    %v753 = vadd.f32 %v697, %v749
    %v754 = vadd.f32 %v698, %v749
    %v755 = vadd.f32 %v699, %v749
    %v756 = vadd.f32 %v700, %v749
    %v757 = vadd.f32 %v701, %v749
    %v758 = vadd.f32 %v702, %v749
    %v759 = vadd.f32 %v703, %v749
    %v760 = vadd.f32 %v704, %v749
    %v761 = vadd.f32 %v705, %v749
    %v762 = vadd.f32 %v706, %v749
    %v763 = vadd.f32 %v707, %v749
    %v764 = vadd.f32 %v708, %v749
    %v765 = vadd.f32 %v709, %v749
    %v766 = vadd.f32 %v710, %v749
    %v767 = vadd.f32 %v711, %v749
    %v768 = vadd.f32 %v712, %v749
    %v769 = vadd.f32 %v713, %v749
    %v770 = vadd.f32 %v714, %v749
    %v771 = vadd.f32 %v715, %v749
    %v772 = vadd.f32 %v716, %v749
    %v773 = vadd.f32 %v717, %v749
    %v774 = vadd.f32 %v718, %v749
    %v775 = vadd.f32 %v719, %v749
    %v776 = vadd.f32 %v720, %v749
    %v777 = vadd.f32 %v721, %v749
    %v778 = vadd.f32 %v722, %v749
    %v779 = vadd.f32 %v723, %v749
    %v780 = vadd.f32 %v724, %v749
    %v781 = vadd.f32 %v725, %v749
    %v782 = vadd.f32 %v726, %v749
    %v783 = vadd.f32 %v727, %v749
    %v784 = vadd.f32 %v728, %v749
    %v785 = vadd.f32 %v729, %v749
    %v786 = vadd.f32 %v730, %v749
    %v787 = vadd.f32 %v731, %v749
    %v788 = vadd.f32 %v732, %v749
    %v789 = vadd.f32 %v733, %v749
    %v790 = vadd.f32 %v734, %v749
    %v791 = vadd.f32 %v735, %v749
    %v792 = vadd.f32 %v736, %v749
    %v793 = vadd.f32 %v737, %v749
    %v794 = vadd.f32 %v738, %v749
    %v795 = vadd.f32 %v739, %v749
    %v796 = vadd.f32 %v740, %v749
    %v797 = vadd.f32 %v741, %v749
    %v798 = vadd.f32 %v742, %v749
    %v799 = vadd.f32 %v743, %v749
    %v800 = vmax.f32 %v751, 0.0
    %v801 = vmax.f32 %v752, 0.0
    %v802 = vmax.f32 %v753, 0.0
    %v803 = vmax.f32 %v754, 0.0
    %v804 = vmax.f32 %v755, 0.0
    %v805 = vmax.f32 %v756, 0.0
    %v806 = vmax.f32 %v757, 0.0
    %v807 = vmax.f32 %v758, 0.0
    %v808 = vmax.f32 %v759, 0.0
    %v809 = vmax.f32 %v760, 0.0
    %v810 = vmax.f32 %v761, 0.0
    %v811 = vmax.f32 %v762, 0.0
    %v812 = vmax.f32 %v763, 0.0
    %v813 = vmax.f32 %v764, 0.0
    %v814 = vmax.f32 %v765, 0.0
    %v815 = vmax.f32 %v766, 0.0
    %v816 = vmax.f32 %v767, 0.0
    %v817 = vmax.f32 %v768, 0.0
    %v818 = vmax.f32 %v769, 0.0
    %v819 = vmax.f32 %v770, 0.0
    %v820 = vmax.f32 %v771, 0.0
    %v821 = vmax.f32 %v772, 0.0
    %v822 = vmax.f32 %v773, 0.0
    %v823 = vmax.f32 %v774, 0.0
    %v824 = vmax.f32 %v775, 0.0
    %v825 = vmax.f32 %v776, 0.0
    %v826 = vmax.f32 %v777, 0.0
    %v827 = vmax.f32 %v778, 0.0
    %v828 = vmax.f32 %v779, 0.0
    %v829 = vmax.f32 %v780, 0.0
    %v830 = vmax.f32 %v781, 0.0
    %v831 = vmax.f32 %v782, 0.0
    %v832 = vmax.f32 %v783, 0.0
    %v833 = vmax.f32 %v784, 0.0
    %v834 = vmax.f32 %v785, 0.0
    %v835 = vmax.f32 %v786, 0.0
    %v836 = vmax.f32 %v787, 0.0
    %v837 = vmax.f32 %v788, 0.0
    %v838 = vmax.f32 %v789, 0.0
    %v839 = vmax.f32 %v790, 0.0
    %v840 = vmax.f32 %v791, 0.0
    %v841 = vmax.f32 %v792, 0.0
    %v842 = vmax.f32 %v793, 0.0
    %v843 = vmax.f32 %v794, 0.0
    %v844 = vmax.f32 %v795, 0.0
    %v845 = vmax.f32 %v796, 0.0
    %v846 = vmax.f32 %v797, 0.0
    %v847 = vmax.f32 %v798, 0.0
    %v848 = vmax.f32 %v799, 0.0
    %v849 = vpack.c.bf16 %v801, %v800
    %v850 = vpack.c.bf16 %v803, %v802
    %v851 = vpack.c.bf16 %v805, %v804
    %v852 = vpack.c.bf16 %v807, %v806
    %v853 = vpack.c.bf16 %v809, %v808
    %v854 = vpack.c.bf16 %v811, %v810
    %v855 = vpack.c.bf16 %v813, %v812
    %v856 = vpack.c.bf16 %v815, %v814
    %v857 = vpack.c.bf16 %v817, %v816
    %v858 = vpack.c.bf16 %v819, %v818
    %v859 = vpack.c.bf16 %v821, %v820
    %v860 = vpack.c.bf16 %v823, %v822
    %v861 = vpack.c.bf16 %v825, %v824
    %v862 = vpack.c.bf16 %v827, %v826
    %v863 = vpack.c.bf16 %v829, %v828
    %v864 = vpack.c.bf16 %v831, %v830
    %v865 = vpack.c.bf16 %v833, %v832
    %v866 = vpack.c.bf16 %v835, %v834
    %v867 = vpack.c.bf16 %v837, %v836
    %v868 = vpack.c.bf16 %v839, %v838
    %v869 = vpack.c.bf16 %v841, %v840
    %v870 = vpack.c.bf16 %v843, %v842
    %v871 = vpack.c.bf16 %v845, %v844
    %v872 = vpack.c.bf16 %v847, %v846
    %v873 = vpack.c.bf16 %v848, %v848
    %v899 = vunpack.c.l.b16 %v849
    %v900 = vunpack.c.h.b16 %v849
    %v901 = vunpack.c.l.b16 %v850
    %v902 = vunpack.c.h.b16 %v850
    %v903 = vunpack.c.l.b16 %v851
    %v904 = vunpack.c.h.b16 %v851
    %v905 = vunpack.c.l.b16 %v852
    %v906 = vunpack.c.h.b16 %v852
    %v907 = vunpack.c.l.b16 %v853
    %v908 = vunpack.c.h.b16 %v853
    %v909 = vunpack.c.l.b16 %v854
    %v910 = vunpack.c.h.b16 %v854
    %v911 = vunpack.c.l.b16 %v855
    %v912 = vunpack.c.h.b16 %v855
    %v913 = vunpack.c.l.b16 %v856
    %v914 = vunpack.c.h.b16 %v856
    %v915 = vunpack.c.l.b16 %v857
    %v916 = vunpack.c.h.b16 %v857
    %v917 = vunpack.c.l.b16 %v858
    %v918 = vunpack.c.h.b16 %v858
    %v919 = vunpack.c.l.b16 %v859
    %v920 = vunpack.c.h.b16 %v859
    %v921 = vunpack.c.l.b16 %v860
    %v922 = vunpack.c.h.b16 %v860
    %v923 = vunpack.c.l.b16 %v861
    %v924 = vunpack.c.h.b16 %v861
    %v925 = vunpack.c.l.b16 %v862
    %v926 = vunpack.c.h.b16 %v862
    %v927 = vunpack.c.l.b16 %v863
    %v928 = vunpack.c.h.b16 %v863
    %v929 = vunpack.c.l.b16 %v864
    %v930 = vunpack.c.h.b16 %v864
    %v931 = vunpack.c.l.b16 %v865
    %v932 = vunpack.c.h.b16 %v865
    %v933 = vunpack.c.l.b16 %v866
    %v934 = vunpack.c.h.b16 %v866
    %v935 = vunpack.c.l.b16 %v867
    %v936 = vunpack.c.h.b16 %v867
    %v937 = vunpack.c.l.b16 %v868
    %v938 = vunpack.c.h.b16 %v868
    %v939 = vunpack.c.l.b16 %v869
    %v940 = vunpack.c.h.b16 %v869
    %v941 = vunpack.c.l.b16 %v870
    %v942 = vunpack.c.h.b16 %v870
    %v943 = vunpack.c.l.b16 %v871
    %v944 = vunpack.c.h.b16 %v871
    %v945 = vunpack.c.l.b16 %v872
    %v946 = vunpack.c.h.b16 %v872
    %v947 = vunpack.c.l.b16 %v873
    %v948 = vpack.c.b16 %v899, %v899
    %v949 = vpack.c.b16 %v900, %v900
    %v950 = vpack.c.b16 %v901, %v901
    %v951 = vpack.c.b16 %v902, %v902
    %v952 = vpack.c.b16 %v903, %v903
    %v953 = vpack.c.b16 %v904, %v904
    %v954 = vpack.c.b16 %v905, %v905
    %v955 = vpack.c.b16 %v906, %v906
    %v956 = vpack.c.b16 %v907, %v907
    %v957 = vpack.c.b16 %v908, %v908
    %v958 = vpack.c.b16 %v909, %v909
    %v959 = vpack.c.b16 %v910, %v910
    %v960 = vpack.c.b16 %v911, %v911
    %v961 = vpack.c.b16 %v912, %v912
    %v962 = vpack.c.b16 %v913, %v913
    %v963 = vpack.c.b16 %v914, %v914
    %v964 = vpack.c.b16 %v915, %v915
    %v965 = vpack.c.b16 %v916, %v916
    %v966 = vpack.c.b16 %v917, %v917
    %v967 = vpack.c.b16 %v918, %v918
    %v968 = vpack.c.b16 %v919, %v919
    %v969 = vpack.c.b16 %v920, %v920
    %v970 = vpack.c.b16 %v921, %v921
    %v971 = vpack.c.b16 %v922, %v922
    %v972 = vpack.c.b16 %v923, %v923
    %v973 = vpack.c.b16 %v924, %v924
    %v974 = vpack.c.b16 %v925, %v925
    %v975 = vpack.c.b16 %v926, %v926
    %v976 = vpack.c.b16 %v927, %v927
    %v977 = vpack.c.b16 %v928, %v928
    %v978 = vpack.c.b16 %v929, %v929
    %v979 = vpack.c.b16 %v930, %v930
    %v980 = vpack.c.b16 %v931, %v931
    %v981 = vpack.c.b16 %v932, %v932
    %v982 = vpack.c.b16 %v933, %v933
    %v983 = vpack.c.b16 %v934, %v934
    %v984 = vpack.c.b16 %v935, %v935
    %v985 = vpack.c.b16 %v936, %v936
    %v986 = vpack.c.b16 %v937, %v937
    %v987 = vpack.c.b16 %v938, %v938
    %v988 = vpack.c.b16 %v939, %v939
    %v989 = vpack.c.b16 %v940, %v940
    %v990 = vpack.c.b16 %v941, %v941
    %v991 = vpack.c.b16 %v942, %v942
    %v992 = vpack.c.b16 %v943, %v943
    %v993 = vpack.c.b16 %v944, %v944
    %v994 = vpack.c.b16 %v945, %v945
    %v995 = vpack.c.b16 %v946, %v946
    %v996 = vpack.c.b16 %v947, %v947
    %vm1046 = vcmask 257024
    %1047 = vst.msk [vmem:[%s4] sm:$0xf] %vm1046, %v948
    %1048 = vst.msk [vmem:[%s4 + $0x4] sm:$0xf] %vm1046, %v949
    %1049 = vst.msk [vmem:[%s4 + $0x8] sm:$0xf] %vm1046, %v950
    %1050 = vst.msk [vmem:[%s4 + $0xc] sm:$0xf] %vm1046, %v951
    %1051 = vst.msk [vmem:[%s4 + $0x10] sm:$0xf] %vm1046, %v952
    %1052 = vst.msk [vmem:[%s4 + $0x14] sm:$0xf] %vm1046, %v953
    %1053 = vst.msk [vmem:[%s4 + $0x18] sm:$0xf] %vm1046, %v954
    %1054 = vst.msk [vmem:[%s4 + $0x1c] sm:$0xf] %vm1046, %v955
    %1055 = vst.msk [vmem:[%s4 + $0x20] sm:$0xf] %vm1046, %v956
    %1056 = vst.msk [vmem:[%s4 + $0x24] sm:$0xf] %vm1046, %v957
    %1057 = vst.msk [vmem:[%s4 + $0x28] sm:$0xf] %vm1046, %v958
    %1058 = vst.msk [vmem:[%s4 + $0x2c] sm:$0xf] %vm1046, %v959
    %1059 = vst.msk [vmem:[%s4 + $0x30] sm:$0xf] %vm1046, %v960
    %1060 = vst.msk [vmem:[%s4 + $0x34] sm:$0xf] %vm1046, %v961
    %1061 = vst.msk [vmem:[%s4 + $0x38] sm:$0xf] %vm1046, %v962
    %1062 = vst.msk [vmem:[%s4 + $0x3c] sm:$0xf] %vm1046, %v963
    %1063 = vst.msk [vmem:[%s4 + $0x40] sm:$0xf] %vm1046, %v964
    %1064 = vst.msk [vmem:[%s4 + $0x44] sm:$0xf] %vm1046, %v965
    %1065 = vst.msk [vmem:[%s4 + $0x48] sm:$0xf] %vm1046, %v966
    %1066 = vst.msk [vmem:[%s4 + $0x4c] sm:$0xf] %vm1046, %v967
    %1067 = vst.msk [vmem:[%s4 + $0x50] sm:$0xf] %vm1046, %v968
    %1068 = vst.msk [vmem:[%s4 + $0x54] sm:$0xf] %vm1046, %v969
    %1069 = vst.msk [vmem:[%s4 + $0x58] sm:$0xf] %vm1046, %v970
    %1070 = vst.msk [vmem:[%s4 + $0x5c] sm:$0xf] %vm1046, %v971
    %1071 = vst.msk [vmem:[%s4 + $0x60] sm:$0xf] %vm1046, %v972
    %1072 = vst.msk [vmem:[%s4 + $0x64] sm:$0xf] %vm1046, %v973
    %1073 = vst.msk [vmem:[%s4 + $0x68] sm:$0xf] %vm1046, %v974
    %1074 = vst.msk [vmem:[%s4 + $0x6c] sm:$0xf] %vm1046, %v975
    %1075 = vst.msk [vmem:[%s4 + $0x70] sm:$0xf] %vm1046, %v976
    %1076 = vst.msk [vmem:[%s4 + $0x74] sm:$0xf] %vm1046, %v977
    %1077 = vst.msk [vmem:[%s4 + $0x78] sm:$0xf] %vm1046, %v978
    %1078 = vst.msk [vmem:[%s4 + $0x7c] sm:$0xf] %vm1046, %v979
    %1079 = vst.msk [vmem:[%s4 + $0x80] sm:$0xf] %vm1046, %v980
    %1080 = vst.msk [vmem:[%s4 + $0x84] sm:$0xf] %vm1046, %v981
    %1081 = vst.msk [vmem:[%s4 + $0x88] sm:$0xf] %vm1046, %v982
    %1082 = vst.msk [vmem:[%s4 + $0x8c] sm:$0xf] %vm1046, %v983
    %1083 = vst.msk [vmem:[%s4 + $0x90] sm:$0xf] %vm1046, %v984
    %1084 = vst.msk [vmem:[%s4 + $0x94] sm:$0xf] %vm1046, %v985
    %1085 = vst.msk [vmem:[%s4 + $0x98] sm:$0xf] %vm1046, %v986
    %1086 = vst.msk [vmem:[%s4 + $0x9c] sm:$0xf] %vm1046, %v987
    %1087 = vst.msk [vmem:[%s4 + $0xa0] sm:$0xf] %vm1046, %v988
    %1088 = vst.msk [vmem:[%s4 + $0xa4] sm:$0xf] %vm1046, %v989
    %1089 = vst.msk [vmem:[%s4 + $0xa8] sm:$0xf] %vm1046, %v990
    %1090 = vst.msk [vmem:[%s4 + $0xac] sm:$0xf] %vm1046, %v991
    %1091 = vst.msk [vmem:[%s4 + $0xb0] sm:$0xf] %vm1046, %v992
    %1092 = vst.msk [vmem:[%s4 + $0xb4] sm:$0xf] %vm1046, %v993
    %1093 = vst.msk [vmem:[%s4 + $0xb8] sm:$0xf] %vm1046, %v994
    %1094 = vst.msk [vmem:[%s4 + $0xbc] sm:$0xf] %vm1046, %v995
    %1095 = vst.msk [vmem:[%s4 + $0xc0] sm:$0xf] %vm1046, %v996
    // Predicated region
    $region22: #{tpu_custom_call.1} parent=1 // pred_check
      _
    $region23: #{tpu_custom_call.1} parent=1 // pred_check_branch
      %1097 = sbr.rel (0) target = $region25
    $region24: #{tpu_custom_call.1} parent=1 // pred_region
      _
    $region25: #{tpu_custom_call.1} parent=1 // pred_fallthru
      _
    // Predicated region
    $region26: #{tpu_custom_call.1} parent=1 // pred_check
      _
    $region27: #{tpu_custom_call.1} parent=1 // pred_check_branch
      %1099 = sbr.rel (0) target = $region29
    $region28: #{tpu_custom_call.1} parent=1 // pred_region
      _
    $region29: #{tpu_custom_call.1} parent=1 // pred_fallthru
      _
    %1100 = vsyncpa [#allocation3], 1

</llo_original>
